<compile_context>
chip_gen: v7x
topology: tpu7x:2x2x1
jax: 0.10.0
libtpu: 0.0.40
codegen_flags: <defaults>
</compile_context>

<pallas_src>
import functools

import jax
import jax.numpy as jnp
from jax import lax
from jax.experimental import pallas as pl
from jax.experimental.pallas import tpu as pltpu


_TILE_VMEM_BUDGET = 32 * 1024 * 1024   # tile working set; comfortable on v7x (64 MiB VMEM)
_VMEM_LIMIT_BYTES = 48 * 1024 * 1024   # explicit scoped-VMEM limit with headroom


def _round_up(x, m):
    return ((x + m - 1) // m) * m


def _choose_hw_tile(HW, N, C, in_itemsize, max_hw_tile=None):
    """Largest HW tile (multiple of 128 dividing HW) that fits the VMEM budget."""
    if HW % 128 != 0:
        # Full-extent block satisfies the (8,128) rule by "equals full dim".
        return HW
    in_sub = N * _round_up(C, 16 if in_itemsize < 4 else 8)   # padded sublanes, input dtype
    f32_sub = N * _round_up(C, 8)                              # padded sublanes, f32 scratch
    # 2 pipeline buffers for the frame input + prev-normalized + accumulator scratch.
    bytes_per_lane = 2 * in_sub * in_itemsize + 2 * f32_sub * 4
    cap = max(128, _TILE_VMEM_BUDGET // bytes_per_lane)
    if max_hw_tile is not None:
        cap = min(cap, max_hw_tile)
    best = 128
    t = 128
    while t <= HW:
        if HW % t == 0 and t <= cap:
            best = t
        t += 128
    return best


def _temporal_loss_kernel(x_ref, out_ref, prev_ref, acc_ref):
    """Grid: axis 0 = HW tile (parallel), axis 1 = frame t (arbitrary, carried).

    x_ref    : (1, N, C, hw_tile) VMEM tile of frame t (input dtype)
    out_ref  : (1, 8, 128) f32 per-HW-tile partial sum (broadcast; wrapper reads [0,0])
    prev_ref : (1, N, C, hw_tile) f32 scratch, normalized previous frame (carry)
    acc_ref  : (1, N, C, hw_tile) f32 scratch, elementwise |diff| accumulator
    """
    t = pl.program_id(1)

    x = x_ref[...].astype(jnp.float32)
    # F.normalize(x, dim=1): x / max(||x||, 1e-12)  ==  x * rsqrt(max(sum(x^2), 1e-24))
    sumsq = jnp.sum(x * x, axis=2, keepdims=True)
    x_norm = x * lax.rsqrt(jnp.maximum(sumsq, jnp.float32(1e-24)))

    @pl.when(t == 0)
    def _():
        acc_ref[...] = jnp.zeros_like(acc_ref)

    @pl.when(t > 0)
    def _():
        # Pure VPU elementwise accumulate; no per-step cross-lane reduce.
        acc_ref[...] += jnp.abs(x_norm - prev_ref[...])

    # Carry the normalized frame for the next grid step (same HW tile, frame t+1).
    prev_ref[...] = x_norm

    @pl.when(t == pl.num_programs(1) - 1)
    def _():
        total = jnp.sum(acc_ref[...])             # single reduce per HW tile
        out_ref[...] = jnp.broadcast_to(total, out_ref.shape).astype(jnp.float32)


def temporal_loss_naive(feats, loss_weight=1.0, max_hw_tile=None):
    """feats: (T, N, C, H, W) stacked feature maps (any float dtype; bf16 OK)."""
    T, N, C, H, W = feats.shape
    assert T >= 2
    HW = H * W
    x = feats.reshape(T, N, C, HW)

    hw_tile = _choose_hw_tile(HW, N, C, jnp.dtype(feats.dtype).itemsize, max_hw_tile)
    num_tiles = HW // hw_tile

    # NOTE(perf): if per-step DMA is still exposed for very small tiles, a deeper
    # input pipeline (pipeline_mode=pl.Buffered(3)) can be added to the frame spec.
    partials = pl.pallas_call(
        _temporal_loss_kernel,
        out_shape=jax.ShapeDtypeStruct((num_tiles, 8, 128), jnp.float32),
        grid_spec=pltpu.PrefetchScalarGridSpec(
            num_scalar_prefetch=0,
            grid=(num_tiles, T),
            in_specs=[
                # frame t, HW tile j — each frame is read from HBM exactly once
                pl.BlockSpec((1, N, C, hw_tile), lambda j, t: (t, 0, 0, j)),
            ],
            out_specs=pl.BlockSpec((1, 8, 128), lambda j, t: (j, 0, 0)),
            scratch_shapes=[
                pltpu.VMEM((1, N, C, hw_tile), jnp.float32),   # prev normalized frame
                pltpu.VMEM((1, N, C, hw_tile), jnp.float32),   # elementwise accumulator
            ],
        ),
        compiler_params=pltpu.CompilerParams(
            dimension_semantics=("parallel", "arbitrary"),
            vmem_limit_bytes=_VMEM_LIMIT_BYTES,
        ),
    )(x)

    # per-pair L1 mean -> /(N*C*HW); average over T-1 pairs; scale by loss_weight
    scale = float(loss_weight) / (N * C * HW * (T - 1))
    return jnp.sum(partials[:, 0, 0]) * jnp.float32(scale)


def _reference(feats, loss_weight=1.0):
    """Pure-JAX reference mirroring the PyTorch forward (norm=True, first order)."""
    T = feats.shape[0]
    f = feats.astype(jnp.float32)
    nrm = jnp.maximum(jnp.sqrt(jnp.sum(f * f, axis=2, keepdims=True)), 1e-12)
    f = f / nrm
    loss = 0.0
    for i in range(T - 1):
        loss += jnp.mean(jnp.abs(f[i] - f[i + 1]))
    return loss / (T - 1) * loss_weight


if __name__ == "__main__":
    key = jax.random.PRNGKey(0)

    # f32 case: 4 frames of NCHW feature maps
    T, N, C, H, W = 4, 2, 4, 16, 16
    feats = jax.random.normal(key, (T, N, C, H, W), dtype=jnp.float32)
    ref = _reference(feats, loss_weight=1.0)

    # default tiling (single HW tile at this size)
    loss = jax.block_until_ready(temporal_loss_naive(feats, loss_weight=1.0))
    assert jnp.allclose(loss, ref, rtol=1e-4, atol=1e-6), (loss, ref)

    # force multiple HW tiles to exercise the parallel spatial axis + carry chain
    loss_tiled = jax.block_until_ready(
        temporal_loss_naive(feats, loss_weight=1.0, max_hw_tile=128))
    assert jnp.allclose(loss_tiled, ref, rtol=1e-4, atol=1e-6), (loss_tiled, ref)

    # bf16 HBM residency path (kernel casts to f32 internally)
    key2 = jax.random.PRNGKey(0)
    Tb, Nb, Cb, Hb, Wb = 3, 2, 16, 8, 16
    feats_bf16 = jax.random.normal(key2, (Tb, Nb, Cb, Hb, Wb), dtype=jnp.float32)
    feats_bf16 = feats_bf16.astype(jnp.bfloat16)
    ref_bf16 = _reference(feats_bf16, loss_weight=1.0)
    loss_bf16 = jax.block_until_ready(temporal_loss_naive(feats_bf16, loss_weight=1.0))
    assert jnp.allclose(loss_bf16, ref_bf16, rtol=1e-3, atol=1e-5), (loss_bf16, ref_bf16)

    print("KERNEL_OK")
</pallas_src>

<mosaic_0001>
module attributes {stable_mosaic.version = 11 : i64} {
  func.func @_temporal_loss_kernel(%arg0: i32, %arg1: i32, %arg2: memref<1x2x4x256xf32, #tpu.memory_space<vmem>>, %arg3: memref<1x8x128xf32, #tpu.memory_space<vmem>>, %arg4: memref<1x2x4x256xf32, #tpu.memory_space<vmem>>, %arg5: memref<1x2x4x256xf32, #tpu.memory_space<vmem>>) attributes {dimension_semantics = [#tpu.dimension_semantics<parallel>, #tpu.dimension_semantics<arbitrary>], iteration_bounds = array<i64: 1, 4>, scalar_prefetch = 0 : i64, scratch_operands = 2 : i64, tpu.core_type = #tpu.core_type<tc>, window_params = [{transform_indices = @transform_0, window_bounds = array<i64: 1, 2, 4, 256>}, {transform_indices = @transform_1, window_bounds = array<i64: 1, 8, 128>}]} {
    %c0 = arith.constant 0 : index
    %c0_0 = arith.constant 0 : index
    %c0_1 = arith.constant 0 : index
    %c0_2 = arith.constant 0 : index
    %0 = vector.load %arg2[%c0, %c0_0, %c0_1, %c0_2] : memref<1x2x4x256xf32, #tpu.memory_space<vmem>>, vector<1x2x4x256xf32>
    %1 = arith.mulf %0, %0 : vector<1x2x4x256xf32>
    %cst = arith.constant dense<0.000000e+00> : vector<1x2x256xf32>
    %2 = vector.multi_reduction <add>, %1, %cst [2] : vector<1x2x4x256xf32> to vector<1x2x256xf32>
    %3 = vector.shape_cast %2 : vector<1x2x256xf32> to vector<1x2x1x256xf32>
    %cst_3 = arith.constant 1.000000e-24 : f32
    %4 = vector.broadcast %cst_3 : f32 to vector<1x2x1x256xf32>
    %5 = arith.maximumf %3, %4 : vector<1x2x1x256xf32>
    %6 = math.rsqrt %5 : vector<1x2x1x256xf32>
    %7 = vector.broadcast %6 : vector<1x2x1x256xf32> to vector<1x2x4x256xf32>
    %8 = arith.mulf %0, %7 : vector<1x2x4x256xf32>
    %c0_i32 = arith.constant 0 : i32
    %9 = arith.cmpi eq, %arg1, %c0_i32 : i32
    %10 = arith.extui %9 : i1 to i32
    %c0_i32_4 = arith.constant 0 : i32
    %11 = arith.cmpi ne, %10, %c0_i32_4 : i32
    scf.if %11 {
      %cst_12 = arith.constant 0.000000e+00 : f32
      %19 = vector.broadcast %cst_12 : f32 to vector<1x2x4x256xf32>
      %c0_13 = arith.constant 0 : index
      %c0_14 = arith.constant 0 : index
      %c0_15 = arith.constant 0 : index
      %c0_16 = arith.constant 0 : index
      %20 = vector.load %arg5[%c0_13, %c0_14, %c0_15, %c0_16] : memref<1x2x4x256xf32, #tpu.memory_space<vmem>>, vector<1x2x4x256xf32>
      tpu.vector_store %arg5[%c0_13, %c0_14, %c0_15, %c0_16], %19 {strides = array<i32>} : memref<1x2x4x256xf32, #tpu.memory_space<vmem>>, vector<1x2x4x256xf32>,
    } else {
    }
    %c0_i32_5 = arith.constant 0 : i32
    %12 = arith.cmpi sgt, %arg1, %c0_i32_5 : i32
    %13 = arith.extui %12 : i1 to i32
    %c0_i32_6 = arith.constant 0 : i32
    %14 = arith.cmpi ne, %13, %c0_i32_6 : i32
    scf.if %14 {
      %c0_12 = arith.constant 0 : index
      %c0_13 = arith.constant 0 : index
      %c0_14 = arith.constant 0 : index
      %c0_15 = arith.constant 0 : index
      %19 = vector.load %arg5[%c0_12, %c0_13, %c0_14, %c0_15] : memref<1x2x4x256xf32, #tpu.memory_space<vmem>>, vector<1x2x4x256xf32>
      %c0_16 = arith.constant 0 : index
      %c0_17 = arith.constant 0 : index
      %c0_18 = arith.constant 0 : index
      %c0_19 = arith.constant 0 : index
      %20 = vector.load %arg4[%c0_16, %c0_17, %c0_18, %c0_19] : memref<1x2x4x256xf32, #tpu.memory_space<vmem>>, vector<1x2x4x256xf32>
      %21 = arith.subf %8, %20 : vector<1x2x4x256xf32>
      %22 = math.absf %21 : vector<1x2x4x256xf32>
      %23 = arith.addf %19, %22 : vector<1x2x4x256xf32>
      %c0_20 = arith.constant 0 : index
      %c0_21 = arith.constant 0 : index
      %c0_22 = arith.constant 0 : index
      %c0_23 = arith.constant 0 : index
      %24 = vector.load %arg5[%c0_20, %c0_21, %c0_22, %c0_23] : memref<1x2x4x256xf32, #tpu.memory_space<vmem>>, vector<1x2x4x256xf32>
      tpu.vector_store %arg5[%c0_20, %c0_21, %c0_22, %c0_23], %23 {strides = array<i32>} : memref<1x2x4x256xf32, #tpu.memory_space<vmem>>, vector<1x2x4x256xf32>,
    } else {
    }
    %c0_7 = arith.constant 0 : index
    %c0_8 = arith.constant 0 : index
    %c0_9 = arith.constant 0 : index
    %c0_10 = arith.constant 0 : index
    %15 = vector.load %arg4[%c0_7, %c0_8, %c0_9, %c0_10] : memref<1x2x4x256xf32, #tpu.memory_space<vmem>>, vector<1x2x4x256xf32>
    tpu.vector_store %arg4[%c0_7, %c0_8, %c0_9, %c0_10], %8 {strides = array<i32>} : memref<1x2x4x256xf32, #tpu.memory_space<vmem>>, vector<1x2x4x256xf32>,
    %c3_i32 = arith.constant 3 : i32
    %16 = arith.cmpi eq, %arg1, %c3_i32 : i32
    %17 = arith.extui %16 : i1 to i32
    %c0_i32_11 = arith.constant 0 : i32
    %18 = arith.cmpi ne, %17, %c0_i32_11 : i32
    scf.if %18 {
      %c0_12 = arith.constant 0 : index
      %c0_13 = arith.constant 0 : index
      %c0_14 = arith.constant 0 : index
      %c0_15 = arith.constant 0 : index
      %19 = vector.load %arg5[%c0_12, %c0_13, %c0_14, %c0_15] : memref<1x2x4x256xf32, #tpu.memory_space<vmem>>, vector<1x2x4x256xf32>
      %20 = vector.shape_cast %19 : vector<1x2x4x256xf32> to vector<1x1x2x4x256xf32>
      %cst_16 = arith.constant dense<0.000000e+00> : vector<1xf32>
      %21 = vector.multi_reduction <add>, %20, %cst_16 [1, 2, 3, 4] : vector<1x1x2x4x256xf32> to vector<1xf32>
      %22 = vector.shape_cast %21 : vector<1xf32> to vector<1x1x1x1x1xf32>
      %23 = vector.extract %22[0, 0, 0, 0, 0] : f32 from vector<1x1x1x1x1xf32>
      %24 = vector.broadcast %23 : f32 to vector<1x8x128xf32>
      %c0_17 = arith.constant 0 : index
      %c0_18 = arith.constant 0 : index
      %c0_19 = arith.constant 0 : index
      %25 = vector.load %arg3[%c0_17, %c0_18, %c0_19] : memref<1x8x128xf32, #tpu.memory_space<vmem>>, vector<1x8x128xf32>
      tpu.vector_store %arg3[%c0_17, %c0_18, %c0_19], %24 {strides = array<i32>} : memref<1x8x128xf32, #tpu.memory_space<vmem>>, vector<1x8x128xf32>,
    } else {
    }
    return
  }
  func.func @transform_0(%arg0: i32, %arg1: i32) -> (i32, i32, i32, i32) {
    %c0_i32 = arith.constant 0 : i32
    %c0_i32_0 = arith.constant 0 : i32
    %c0_i32_1 = arith.constant 0 : i32
    return %arg1, %c0_i32, %c0_i32_0, %arg0 : i32, i32, i32, i32
  }
  func.func @transform_1(%arg0: i32, %arg1: i32) -> (i32, i32, i32) {
    %c0_i32 = arith.constant 0 : i32
    %c0_i32_0 = arith.constant 0 : i32
    %c0_i32_1 = arith.constant 0 : i32
    return %arg0, %c0_i32, %c0_i32_0 : i32, i32, i32
  }
}

</mosaic_0001>

<llo_original>
// kernel: tpu_custom_call.1
$region0: #{tpu_custom_call.1}
  #allocation0 [shape = 'u32[]', space=smem, size = 0x4, offset = 0x4, fixed_abs, tag = 'smem constant byte address 0x4 - core index']
  #allocation1 [shape = 'u32[144,128]{1,0:T(1,128)}', space=vmem, size = 0x12000, scoped, tag = 'internal scratch']
  #allocation2 [shape = 'f32[1,2,4,256]{3,2,1,0:T(4,128)}', space=vmem, size = 0x2000, scoped, tag = 'scratch operand']
  #allocation3 [shape = 'f32[1,2,4,256]{3,2,1,0:T(4,128)}', space=vmem, size = 0x2000, scoped, tag = 'scratch operand']
  %s0 = inlined_call_operand.hbm [shape: f32[4,2,4,256], index: 0, kind: input, shape index: {}]
  %s1 = inlined_call_operand.hbm [shape: f32[1,8,128], index: 1, kind: output, shape index: {}]
  %s2 = sld [smem:[#allocation0]]
  $region53: #{tpu_custom_call.1} parent=0
    _
  %s4 = ssub.s32 1, %s2
  %s5 = scalar_select 0, %s4, %s2
  $region1: #{tpu_custom_call.1} parent=0
    #allocation4 [shape = 'u8[16384]{0}', space=vmem, size = 0x4000, scoped, tag = 'input window, operand 0']
    #allocation5 [shape = 's32[2]{0}', space=sflag, size = 0x8, scoped, tag = 'scoped memory for tpu_custom_call.1']
    #allocation6 [shape = 's32[2]{0}', space=sflag, size = 0x8, scoped, tag = 'scoped memory for tpu_custom_call.1']
    #allocation7 [shape = 'u8[4096]{0}', space=vmem, size = 0x1000, scoped, tag = 'output window, operand 0, single buffered']
    %6 = vsyncpa [#allocation5], 0
    %s7 = scalar_lea.sflag [#allocation5], 1
    %8 = vsyncpa %s7, 0
    %9 = vsyncpa [#allocation6], 0
    loop: start=0, step=1, limit=6
    $region2: #{tpu_custom_call.1} parent=1 // loop_pre_header
      _
    $region3: #{tpu_custom_call.1} parent=1 // loop_header
      %s11 = sphi 0, %s15
      %p12 = scmp.ge.s32.totalorder %s11, 6
      %s18 = sphi 0, %s30
      %s19 = sphi 0, %s26
      %s20 = sphi 0, %s18
      %s21 = sphi 0, %s19
      %s22 = sphi 0, %s20
      %s23 = sphi 0, %s21
      %s35 = sphi 0, %s37
      %s38 = sphi 0, %s35
      %s39 = sphi 0, %s38
      %s55 = sphi 0, %s39
      %s61 = sphi 0, %s63
      %s64 = sphi 0, %s61
      %s65 = sphi 0, %s64
      %s81 = sphi 0, %s65
    $region4: #{tpu_custom_call.1} parent=1 // loop_header_branch
      %14 = sbr.rel (%p12) target = $region8
    $region5: #{tpu_custom_call.1} parent=1 // loop_body
      %s16 = ssub.s32 %s11, 1
      %s17 = ssub.s32 %s11, 2
      %s24 = sadd.s32 1, %s19
      %p25 = scmp.ge.s32.totalorder %s24, 4
      %s26 = scalar_select %p25, 0, %s24
      %s27 = sadd.s32 1, %s18
      %s28 = scalar_select %p25, %s27, %s18
      %p29 = scmp.ge.s32.totalorder %s28, 1
      %s30 = scalar_select %p29, 0, %s28
      %s31 = ssub.s32 %s19, %s26
      %s32 = ssub.s32 %s18, %s30
      %s33 = sor.u32 %s31, %s32
      %p34 = scmp.eq.s32.totalorder %s33, 0
      %s36 = sadd.s32 %s35, 1
      %s37 = scalar_select %p34, %s35, %s36
      %p40 = pneg %p34
      %p41 = scmp.eq.s32.totalorder %s11, 3
      %p42 = por %p40, %p41
      %p43 = scmp.ne.s32.totalorder %s35, %s38
      %p44 = scmp.eq.s32.totalorder %s11, 0
      %p45 = por %p43, %p44
      %p46 = scmp.ne.s32.totalorder %s35, %s38
      %p47 = scmp.eq.s32.totalorder %s16, 3
      %p48 = por %p46, %p47
      %p49 = scmp.ne.s32.totalorder %s38, %s39
      %p50 = scmp.eq.s32.totalorder %s16, 0
      %p51 = por %p49, %p50
      %p52 = scmp.ne.s32.totalorder %s38, %s39
      %p53 = scmp.eq.s32.totalorder %s17, 3
      %p54 = por %p52, %p53
      %p56 = scmp.ne.s32.totalorder %s39, %s55
      %p57 = scmp.eq.s32.totalorder %s17, 0
      %p58 = por %p56, %p57
      %s59 = ssub.s32 %s18, %s30
      %p60 = scmp.eq.s32.totalorder %s59, 0
      %s62 = sadd.s32 %s61, 1
      %s63 = scalar_select %p60, %s61, %s62
      %p66 = pneg %p60
      %p67 = scmp.eq.s32.totalorder %s11, 3
      %p68 = por %p66, %p67
      %p69 = scmp.ne.s32.totalorder %s61, %s64
      %p70 = scmp.eq.s32.totalorder %s11, 0
      %p71 = por %p69, %p70
      %p72 = scmp.ne.s32.totalorder %s61, %s64
      %p73 = scmp.eq.s32.totalorder %s16, 3
      %p74 = por %p72, %p73
      %p75 = scmp.ne.s32.totalorder %s64, %s65
      %p76 = scmp.eq.s32.totalorder %s16, 0
      %p77 = por %p75, %p76
      %p78 = scmp.ne.s32.totalorder %s64, %s65
      %p79 = scmp.eq.s32.totalorder %s17, 3
      %p80 = por %p78, %p79
      %p82 = scmp.ne.s32.totalorder %s65, %s81
      %p83 = scmp.eq.s32.totalorder %s17, 0
      %p84 = por %p82, %p83
      %p85 = scmp.le.s32.totalorder 1, %s11
      %p86 = scmp.lt.s32.totalorder %s11, 5
      %p87 = pnand %p85, %p86
      %p88 = pneg %p87
      // Predicated region
      $region9: #{tpu_custom_call.1} parent=5 // pred_check
        _
      $region10: #{tpu_custom_call.1} parent=5 // pred_check_branch
        %90 = sbr.rel (%p87) target = $region12
      $region11: #{tpu_custom_call.1} parent=5 // pred_region
        %s91 = ssub.s32 %s11, 1
      $region12: #{tpu_custom_call.1} parent=5 // pred_fallthru
        _
      %p92 = scmp.lt.s32.totalorder %s11, 4
      // Predicated region
      $region13: #{tpu_custom_call.1} parent=5 // pred_check
        %p93 = pneg %p92
      $region14: #{tpu_custom_call.1} parent=5 // pred_check_branch
        %95 = sbr.rel (%p93) target = $region16
      $region15: #{tpu_custom_call.1} parent=5 // pred_region
        // Predicated region
        $region17: #{tpu_custom_call.1} parent=15 // pred_check
          %p96 = pneg %p45
        $region18: #{tpu_custom_call.1} parent=15 // pred_check_branch
          %98 = sbr.rel (%p96) target = $region20
        $region19: #{tpu_custom_call.1} parent=15 // pred_region
          %s99 = sand.u32 %s35, 1
          %s100 = scalar_lea.sflag [#allocation5], %s99
          %s101 = sand.u32 %s35, 1
          %s102 = smul.addr %s101, 16
          %s103 = scalar_lea.vmem [#allocation4], %s102
          %s104 = smul.u32 2, %s18
          %s106 = ssub.s32 256, 256
          %107 = vsyncadd %s100, %s106
          %s108 = smul.addr %s19, 4
          %s109 = sadd.s32 %s104, %s108
          %s110 = smul.addr %s109, 64
          %s111 = scalar_lea.hbm %s0, %s110
          %s112 = sshll.u32 %s103, 4
          %s113 = int_to_ptr.vmem [resolvable:$true] %s112
          %118 = dma.hbm_to_vmem [thread:$0]  %s111, 256, %s113, %s100, 128, 128, 8
        $region20: #{tpu_custom_call.1} parent=15 // pred_fallthru
          _
      $region16: #{tpu_custom_call.1} parent=5 // pred_fallthru
        _
      %p119 = scmp.le.s32.totalorder 1, %s11
      %p120 = scmp.lt.s32.totalorder %s11, 5
      %p121 = pnand %p119, %p120
      %p122 = pneg %p121
      // Predicated region
      $region21: #{tpu_custom_call.1} parent=5 // pred_check
        _
      $region22: #{tpu_custom_call.1} parent=5 // pred_check_branch
        %124 = sbr.rel (%p121) target = $region24
      $region23: #{tpu_custom_call.1} parent=5 // pred_region
        %s125 = ssub.s32 %s11, 1
        %s126 = sand.u32 %s38, 1
        %s127 = scalar_lea.sflag [#allocation5], %s126
        %s128 = sand.u32 %s38, 1
        %s129 = smul.addr %s128, 16
        %s130 = scalar_lea.vmem [#allocation4], %s129
        // Predicated region
        $region25: #{tpu_custom_call.1} parent=23 // pred_check
          %p131 = pneg %p51
        $region26: #{tpu_custom_call.1} parent=23 // pred_check_branch
          %133 = sbr.rel (%p131) target = $region28
        $region27: #{tpu_custom_call.1} parent=23 // pred_region
          %134 = dma.done %s127, 256
        $region28: #{tpu_custom_call.1} parent=23 // pred_fallthru
          _
        %s135 = sand.u32 %s38, 1
        %s136 = scalar_lea.sflag [#allocation5], %s135
        %s137 = sand.u32 %s38, 1
        %s138 = smul.addr %s137, 16
        %s139 = scalar_lea.vmem [#allocation4], %s138
        %p140 = pneg %p51
        %p141 = pneg %p48
        %p142 = pneg %p77
        %p143 = pneg %p74
        %s144 = smul.u32 2, %s20
        %v145 = vld [vmem:[%s130] sm:$0xff]
        %v146 = vld [vmem:[%s130 + $0x8] sm:$0xff]
        %v147 = vmul.f32 %v145, %v145
        %v148 = vmul.f32 %v146, %v146
        %v151 = vcombine.high %v147, %v147
        %v152 = vcombine.high %v148, %v148
        %vm155 = vcmask 1043456
        %v156 = vsel %vm155, %v147, 0.0
        %v157 = vrot.slane %v156, 4
        %v158 = vadd.f32 %v156, %v157
        %v159 = vrot.slane %v158, 2
        %v160 = vadd.f32 %v158, %v159
        %v161 = vrot.slane %v160, 1
        %v162 = vadd.f32 %v160, %v161
        %v163 = vsel %vm155, %v151, 0.0
        %v164 = vrot.slane %v163, 4
        %v165 = vadd.f32 %v163, %v164
        %v166 = vrot.slane %v165, 2
        %v167 = vadd.f32 %v165, %v166
        %v168 = vrot.slane %v167, 1
        %v169 = vadd.f32 %v167, %v168
        %v170 = vsel %vm155, %v148, 0.0
        %v171 = vrot.slane %v170, 4
        %v172 = vadd.f32 %v170, %v171
        %v173 = vrot.slane %v172, 2
        %v174 = vadd.f32 %v172, %v173
        %v175 = vrot.slane %v174, 1
        %v176 = vadd.f32 %v174, %v175
        %v177 = vsel %vm155, %v152, 0.0
        %v178 = vrot.slane %v177, 4
        %v179 = vadd.f32 %v177, %v178
        %v180 = vrot.slane %v179, 2
        %v181 = vadd.f32 %v179, %v180
        %v182 = vrot.slane %v181, 1
        %v183 = vadd.f32 %v181, %v182
        %v184 = vmax.f32 %v162, 1e-24
        %v185 = vmax.f32 %v169, 1e-24
        %v186 = vmax.f32 %v176, 1e-24
        %v187 = vmax.f32 %v183, 1e-24
        %v188 = vrsqrt.pop %v184
        %v189 = vrsqrt.pop %v185
        %v190 = vrsqrt.pop %v186
        %v191 = vrsqrt.pop %v187
        %v196 = vcombine.low %v188, %v189
        %v197 = vcombine.low %v190, %v191
        %v200 = vmul.f32 %v145, %v196
        %v201 = vmul.f32 %v146, %v197
        %p202 = scmp.eq.s32.totalorder %s21, 0
        // Predicated region
        $region29: #{tpu_custom_call.1} parent=23 // pred_check
          %p203 = pneg %p202
        $region30: #{tpu_custom_call.1} parent=23 // pred_check_branch
          %205 = sbr.rel (%p203) target = $region32
        $region31: #{tpu_custom_call.1} parent=23 // pred_region
          %206 = vst [vmem:[#allocation3] sm:$0xff] 0.0
          %207 = vst [vmem:[#allocation3 + $0x8] sm:$0xff] 0.0
        $region32: #{tpu_custom_call.1} parent=23 // pred_fallthru
          _
        %p208 = scmp.gt.s32.totalorder %s21, 0
        // Predicated region
        $region33: #{tpu_custom_call.1} parent=23 // pred_check
          %p209 = pneg %p208
        $region34: #{tpu_custom_call.1} parent=23 // pred_check_branch
          %211 = sbr.rel (%p209) target = $region36
        $region35: #{tpu_custom_call.1} parent=23 // pred_region
          %v212 = vld [vmem:[#allocation3] sm:$0xff]
          %v213 = vld [vmem:[#allocation3 + $0x8] sm:$0xff]
          %v214 = vld [vmem:[#allocation2] sm:$0xff]
          %v215 = vld [vmem:[#allocation2 + $0x8] sm:$0xff]
          %v216 = vsub.f32 %v200, %v214
          %v217 = vsub.f32 %v201, %v215
          %v218 = vand.u32 2147483647, %v216
          %v219 = vand.u32 2147483647, %v217
          %v220 = vadd.f32 %v212, %v218
          %v221 = vadd.f32 %v213, %v219
          %222 = vst [vmem:[#allocation3] sm:$0xff] %v220
          %223 = vst [vmem:[#allocation3 + $0x8] sm:$0xff] %v221
        $region36: #{tpu_custom_call.1} parent=23 // pred_fallthru
          _
        %224 = vst [vmem:[#allocation2] sm:$0xff] %v200
        %225 = vst [vmem:[#allocation2 + $0x8] sm:$0xff] %v201
        %p226 = scmp.eq.s32.totalorder %s21, 3
        // Predicated region
        $region37: #{tpu_custom_call.1} parent=23 // pred_check
          %p227 = pneg %p226
        $region38: #{tpu_custom_call.1} parent=23 // pred_check_branch
          %229 = sbr.rel (%p227) target = $region40
        $region39: #{tpu_custom_call.1} parent=23 // pred_region
          %v230 = vld [vmem:[#allocation3] sm:$0xff]
          %v231 = vld [vmem:[#allocation3 + $0x8] sm:$0xff]
          %v234 = vcombine.high %v230, %v230
          %v235 = vcombine.high %v231, %v231
          %v238 = vsel %vm155, %v230, 0.0
          %v239 = vsel %vm155, %v234, 0.0
          %v240 = vadd.f32 %v238, %v239
          %v241 = vsel %vm155, %v231, 0.0
          %v242 = vadd.f32 %v240, %v241
          %v243 = vsel %vm155, %v235, 0.0
          %v244 = vadd.f32 %v242, %v243
          %245 = vadd.xlane.f32.xlu0 %v244
          %v246 = vpop.xlane.xlu0 %245
          %v247 = vrot.slane %v246, 4
          %v248 = vadd.f32 %v246, %v247
          %v249 = vrot.slane %v248, 2
          %v250 = vadd.f32 %v248, %v249
          %v251 = vrot.slane %v250, 1
          %v252 = vadd.f32 %v250, %v251
          %s253 = vtos %v252
          %v254 = vstv %s253
          %255 = vst [vmem:[#allocation7] sm:$0xff] %v254
        $region40: #{tpu_custom_call.1} parent=23 // pred_fallthru
          _
        // Predicated region
        $region41: #{tpu_custom_call.1} parent=23 // pred_check
          %p256 = pneg %p74
        $region42: #{tpu_custom_call.1} parent=23 // pred_check_branch
          %258 = sbr.rel (%p256) target = $region44
        $region43: #{tpu_custom_call.1} parent=23 // pred_region
          %s260 = ssub.s32 128, 128
          %261 = vsyncadd [#allocation6], %s260
          %s262 = smul.addr %s20, 128
          %s263 = scalar_lea.hbm %s1, %s262
          %s265 = sshll.u32 [#allocation7], 4
          %s266 = int_to_ptr.vmem [resolvable:$true] %s265
          %268 = dma.vmem_to_hbm [thread:$0]  %s266, 128, %s263, [#allocation6]
        $region44: #{tpu_custom_call.1} parent=23 // pred_fallthru
          _
        // Predicated region
        $region45: #{tpu_custom_call.1} parent=23 // pred_check
          %p269 = pneg %p74
        $region46: #{tpu_custom_call.1} parent=23 // pred_check_branch
          %271 = sbr.rel (%p269) target = $region48
        $region47: #{tpu_custom_call.1} parent=23 // pred_region
          %272 = dma.done [#allocation6], 128
        $region48: #{tpu_custom_call.1} parent=23 // pred_fallthru
          _
      $region24: #{tpu_custom_call.1} parent=5 // pred_fallthru
        _
      %p273 = scmp.le.s32.totalorder 2, %s11
      // Predicated region
      $region49: #{tpu_custom_call.1} parent=5 // pred_check
        %p274 = pneg %p273
      $region50: #{tpu_custom_call.1} parent=5 // pred_check_branch
        %276 = sbr.rel (%p274) target = $region52
      $region51: #{tpu_custom_call.1} parent=5 // pred_region
        %s277 = ssub.s32 %s11, 2
      $region52: #{tpu_custom_call.1} parent=5 // pred_fallthru
        _
    $region6: #{tpu_custom_call.1} parent=1 // loop_footer
      %s15 = sadd.s32 1, %s11
    $region7: #{tpu_custom_call.1} parent=1 // loop_footer_branch
      %10 = sbr.rel target = $region3
    $region8: #{tpu_custom_call.1} parent=1 // loop_exit
      _
    %278 = vsyncpa [#allocation5], 1
    %s279 = scalar_lea.sflag [#allocation5], 1
    %280 = vsyncpa %s279, 1
    %281 = vsyncpa [#allocation6], 1
    %s282 = scalar_lea.sflag [#allocation6], 1
    %283 = vsyncpa %s282, 1

</llo_original>
